<compile_context>
chip_gen: v7x
topology: tpu7x:2x2x1
jax: 0.10.0
libtpu: 0.0.40
codegen_flags: <defaults>
</compile_context>

<pallas_src>
import math
import numpy as np

import jax
import jax.numpy as jnp
from jax.experimental import pallas as pl
from jax.experimental.pallas import tpu as pltpu

# ----------------------------- configuration ------------------------------
D_MODEL = 32          # hidden_dim
NHEAD = 4
DHEAD = D_MODEL // NHEAD
DFF = 64              # dim_feedforward (small synthetic)
NUM_BODY_POINTS = 17
PATCH = 8             # synthetic patch size
TEMP = 10000.0
DPC = D_MODEL // 2    # dim_per_coord in BBoxPositionalEncoding
LANES = 128
KP_PAD = 128          # lane-dense keypoint output width (51 real cols)
FEAT_PAD = 128        # lane-dense patch-feature width (32 real cols)
LN_EPS = 1e-5
CDT = jnp.bfloat16    # MXU operand dtype (f32 accumulation)
W_ROW_ALIGN = 16      # bf16 sublane packing alignment for the weight slab


# --------------------------- in-kernel helpers -----------------------------
def _mm(a, b):
    """a @ b with bf16 operands and f32 accumulation on the MXU."""
    return jax.lax.dot_general(a.astype(CDT), b.astype(CDT),
                               (((1,), (0,)), ((), ())),
                               preferred_element_type=jnp.float32)


def _mm_nt(a, b):
    """a @ b.T with bf16 operands and f32 accumulation on the MXU."""
    return jax.lax.dot_general(a.astype(CDT), b.astype(CDT),
                               (((1,), (1,)), ((), ())),
                               preferred_element_type=jnp.float32)


def _layernorm(x, g, b):
    mu = jnp.mean(x, axis=-1, keepdims=True)
    var = jnp.mean(jnp.square(x - mu), axis=-1, keepdims=True)
    return (x - mu) * jax.lax.rsqrt(var + LN_EPS) * g + b


def _attend(q, k, v, wo, bo, key_bias):
    """Multi-head attention core on already-projected q/k/v.

    q:[Lq,D], k/v:[Lk,D] (heads packed on lanes, 1/sqrt(dh) pre-folded into q).
    Scores are head-stacked to [H*Lq, Lk] so max/exp/sum/normalize run ONCE on
    a full vreg instead of 4x on tiny arrays; the head-merge + output
    projection is ONE [Lq, H*dh] x [H*dh, D] matmul.
    """
    Lq = q.shape[0]
    s = jnp.concatenate(
        [_mm_nt(q[:, h * DHEAD:(h + 1) * DHEAD], k[:, h * DHEAD:(h + 1) * DHEAD])
         for h in range(NHEAD)], axis=0)                       # [H*Lq, Lk]
    if key_bias is not None:
        s = s + key_bias
    s = s - jnp.max(s, axis=-1, keepdims=True)
    p = jnp.exp(s)
    p = p / jnp.sum(p, axis=-1, keepdims=True)                 # exact (parity)
    ctx = jnp.concatenate(
        [_mm(p[h * Lq:(h + 1) * Lq, :], v[:, h * DHEAD:(h + 1) * DHEAD])
         for h in range(NHEAD)], axis=-1)                      # [Lq, H*dh]
    return _mm(ctx, wo) + bo


# ----------------- fused PE + decoder layer + keypoint kernel ---------------
def _make_decoder_kernel(w_ofs, v_ofs):
    """Kernel closure over static slab offsets ({name: (row, rows, cols)})."""

    def kernel(boxes_ref, mem_ref, bias_ref, w_ref, v_ref, o_ref):
        def W(name):                       # bf16 matmul-weight slab slice
            r, n, c = w_ofs[name]
            return w_ref[r:r + n, :c]

        def V(name):                       # f32 bias / LN-param row
            r, c = v_ofs[name]
            return v_ref[r:r + 1, :c]

        boxes = boxes_ref[0]               # [Q, 4]  (cx, cy, w, h)
        mem = mem_ref[0]                   # [P, 128] (cols 32: are zero pad)
        kbias = bias_ref[0]                # [1, Q] additive key-padding bias

        # --- bbox sinusoidal PE + MLP + learnable query (fused in-kernel) ---
        # angles via one matmul against the precomputed 1/dim_t projection;
        # sin/cos land on the otherwise idle EUP slot.
        ang = _mm(boxes, W("pe_A"))                            # [Q, 4*DPC]
        col = jax.lax.broadcasted_iota(jnp.int32, ang.shape, 1)
        pe = jnp.where(col % 2 == 0, jnp.sin(ang), jnp.cos(ang))
        h = jnp.maximum(_mm(pe, W("pe_w1")) + V("pe_b1"), 0.0)
        tgt = _mm(h, W("pe_w2")) + V("pe_b2q")                 # [Q, D] (+query_embed)

        # --- self-attention (packed QKV: one matmul) + residual + LN --------
        qkv = _mm(tgt, W("sa_wqkv")) + V("sa_bqkv")            # [Q, 3D]
        sa = _attend(qkv[:, :D_MODEL], qkv[:, D_MODEL:2 * D_MODEL],
                     qkv[:, 2 * D_MODEL:], W("sa_wo"), V("sa_bo"), kbias)
        tgt = _layernorm(tgt + sa, V("ln1_g"), V("ln1_b"))

        # --- cross-attention to patch memory (packed KV) + residual + LN ----
        qc = _mm(tgt, W("ca_wq")) + V("ca_bq")                 # [Q, D]
        kv = _mm(mem, W("ca_wkv")) + V("ca_bkv")               # [P, 2D]
        ca = _attend(qc, kv[:, :D_MODEL], kv[:, D_MODEL:],
                     W("ca_wo"), V("ca_bo"), None)
        tgt = _layernorm(tgt + ca, V("ln2_g"), V("ln2_b"))

        # --- FFN + residual + LN --------------------------------------------
        h = jnp.maximum(_mm(tgt, W("ffn_w1")) + V("ffn_b1"), 0.0)
        tgt = _layernorm(tgt + _mm(h, W("ffn_w2")) + V("ffn_b2"),
                         V("ln3_g"), V("ln3_b"))

        # --- keypoint head (shared MLP + split heads, xyxyzz order baked in) -
        h = jnp.maximum(_mm(tgt, W("kp_w1")) + V("kp_b1"), 0.0)
        sh = _mm(h, W("kp_w2")) + V("kp_b2")
        kp = jax.nn.sigmoid(_mm(sh, W("kp_split")) + V("kp_split_b"))
        o_ref[0] = kp.astype(o_ref.dtype)                      # [Q, 128] lane-dense

    return kernel


def decoder_and_keypoints(boxes_pad, memory, bias, prep):
    """One pallas_call per forward: PE + decoder layer + keypoint head."""
    # TODO(synk): QFormer class definition not provided; implemented as the
    # canonical single post-norm transformer decoder layer (self-attn over
    # queries with key_padding_mask, cross-attn to patch memory, ReLU FFN,
    # dropout = identity in eval mode).
    B, Q, _ = boxes_pad.shape
    P = memory.shape[1]
    w_slab, v_slab = prep["w_slab"], prep["v_slab"]
    kernel = _make_decoder_kernel(prep["w_ofs"], prep["v_ofs"])

    return pl.pallas_call(
        kernel,
        out_shape=jax.ShapeDtypeStruct((B, Q, KP_PAD), jnp.float32),
        grid=(B,),
        in_specs=[
            pl.BlockSpec((1, Q, 4), lambda b: (b, 0, 0)),
            pl.BlockSpec((1, P, FEAT_PAD), lambda b: (b, 0, 0)),
            pl.BlockSpec((1, 1, Q), lambda b: (b, 0, 0)),
            pl.BlockSpec(w_slab.shape, lambda b: (0, 0)),      # one slab DMA
            pl.BlockSpec(v_slab.shape, lambda b: (0, 0)),      # one slab DMA
        ],
        out_specs=pl.BlockSpec((1, Q, KP_PAD), lambda b: (b, 0, 0)),
        compiler_params=pltpu.CompilerParams(dimension_semantics=("parallel",)),
    )(boxes_pad, memory, bias, w_slab, v_slab)


# --------------------------- patch-embed kernel -----------------------------
def _patch_embed_kernel(x_ref, w_ref, b_ref, o_ref):
    o_ref[...] = (_mm(x_ref[...], w_ref[...]) + b_ref[...]).astype(o_ref.dtype)


def clip_projector(samples, prep):
    """Synthetic CLIP backbone: stride-P patch embedding -> [B, P, 128]."""
    # TODO(synk): real ClipProjector wraps a pretrained CLIP ViT; class
    # definition not provided, replaced by a deterministic patch-embedding
    # projection.  TODO(synk): at real CLIP resolutions move this patchify
    # (transpose) into the BlockSpec/index_map (block (1,C,p,p) walking the
    # patch grid) and raise the tile cap to 1024-2048 on v6e/v5e with
    # vmem_limit_bytes set explicitly (keep <=512-1024 on v7x's 64 MiB VMEM).
    B, C, H, Wd = samples.shape
    p = PATCH
    x = samples.reshape(B, C, H // p, p, Wd // p, p)
    x = x.transpose(0, 2, 4, 1, 3, 5).reshape(B * (H // p) * (Wd // p), C * p * p)
    M, K = x.shape

    # at least 2 grid steps when possible so v7x's 2 TensorCores both work
    bm = min(512, max(8, ((M + 1) // 2 + 7) // 8 * 8))
    grid = (pl.cdiv(M, bm),)
    wf, bf = prep["patch_w_pad"], prep["patch_b_pad"]

    feats = pl.pallas_call(
        _patch_embed_kernel,
        out_shape=jax.ShapeDtypeStruct((M, FEAT_PAD), jnp.float32),
        grid=grid,
        in_specs=[pl.BlockSpec((bm, K), lambda i: (i, 0)),
                  pl.BlockSpec(wf.shape, lambda i: (0, 0)),
                  pl.BlockSpec(bf.shape, lambda i: (0, 0))],
        out_specs=pl.BlockSpec((bm, FEAT_PAD), lambda i: (i, 0)),
        compiler_params=pltpu.CompilerParams(dimension_semantics=("parallel",)),
    )(x, wf, bf)
    return feats.reshape(B, (H // p) * (Wd // p), FEAT_PAD)


# ------------------------------ full forward -------------------------------
def clip_detr_forward(samples, targets, prep):
    memory = clip_projector(samples, prep)                      # [B, P, 128]
    B = samples.shape[0]

    # TODO(synk): the per-target box-count inspection is shape-dependent and
    # retraces when counts change between calls; acceptable host-side prep.
    query_counts, boxes_list = [], []
    for target in targets:
        boxes = target.get("boxes", None)
        n = 0 if boxes is None else int(boxes.shape[0])
        query_counts.append(n)
        if n > 0:
            boxes_list.append(boxes)

    if sum(query_counts) == 0:
        return {"pred_keypoints": jnp.zeros((B, 0, 3 * NUM_BODY_POINTS), jnp.float32)}

    all_boxes = jnp.concatenate(boxes_list, axis=0)             # [total, 4]
    max_q = max(query_counts)

    # single scatter for padded boxes + padding mask (no per-target .at loops)
    rows = np.concatenate([np.full(c, i, np.int32) for i, c in enumerate(query_counts)]
                          or [np.zeros(0, np.int32)])
    cols = np.concatenate([np.arange(c, dtype=np.int32) for c in query_counts]
                          or [np.zeros(0, np.int32)])
    boxes_pad = jnp.zeros((B, max_q, 4), jnp.float32).at[rows, cols].set(all_boxes)
    mask = jnp.ones((B, max_q), dtype=bool).at[rows, cols].set(False)
    bias = jnp.where(mask, -1e9, 0.0).astype(jnp.float32)[:, None, :]  # [B,1,Q]

    kp_pad = decoder_and_keypoints(boxes_pad, memory, bias, prep)      # [B,Q,128]
    kp = kp_pad[:, :, :3 * NUM_BODY_POINTS]                            # xyxyzz order
    kp = jnp.where(mask[:, :, None], 0.0, kp)                          # zero padded queries
    return {"pred_keypoints": kp, "padding_mask": mask}


# ------------------------------ parameters ---------------------------------
def init_params(key):
    keys = iter(jax.random.split(key, 64))

    def w(shape, scale=0.05):
        return (scale * jax.random.normal(next(keys), shape)).astype(jnp.float32)

    def z(n):
        return jnp.zeros((n,), jnp.float32)

    def attn_params():
        return {"wq": w((D_MODEL, D_MODEL)), "bq": z(D_MODEL),
                "wk": w((D_MODEL, D_MODEL)), "bk": z(D_MODEL),
                "wv": w((D_MODEL, D_MODEL)), "bv": z(D_MODEL),
                "wo": w((D_MODEL, D_MODEL)), "bo": z(D_MODEL)}

    patch_dim = 3 * PATCH * PATCH
    return {
        "patch_w": w((patch_dim, D_MODEL)), "patch_b": z(D_MODEL),
        "pe_w1": w((4 * DPC, D_MODEL)), "pe_b1": z(D_MODEL),
        "pe_w2": w((D_MODEL, D_MODEL)), "pe_b2": z(D_MODEL),
        "query_embed": w((1, D_MODEL)),
        "self_attn": attn_params(),
        "cross_attn": attn_params(),
        "ln1_g": jnp.ones((D_MODEL,), jnp.float32), "ln1_b": z(D_MODEL),
        "ln2_g": jnp.ones((D_MODEL,), jnp.float32), "ln2_b": z(D_MODEL),
        "ln3_g": jnp.ones((D_MODEL,), jnp.float32), "ln3_b": z(D_MODEL),
        "ffn_w1": w((D_MODEL, DFF)), "ffn_b1": z(DFF),
        "ffn_w2": w((DFF, D_MODEL)), "ffn_b2": z(D_MODEL),
        "kp_share_w1": w((D_MODEL, D_MODEL)), "kp_share_b1": z(D_MODEL),
        "kp_share_w2": w((D_MODEL, D_MODEL)), "kp_share_b2": z(D_MODEL),
        "kp_split_w": w((D_MODEL, 3 * NUM_BODY_POINTS)),
        "kp_split_b": z(3 * NUM_BODY_POINTS),
    }


# -------------------------- offline weight packing --------------------------
def _pack_weight_slab(entries):
    """Pack 2-D matmul weights into one bf16 [rows, 128] lane-dense slab."""
    ofs, row = {}, 0
    for name, a in entries:
        r, c = a.shape
        assert c <= LANES
        ofs[name] = (row, r, c)
        row += ((r + W_ROW_ALIGN - 1) // W_ROW_ALIGN) * W_ROW_ALIGN
    slab = np.zeros((row, LANES), np.float32)
    for name, a in entries:
        r0, r, c = ofs[name]
        slab[r0:r0 + r, :c] = np.asarray(a, np.float32)
    return jnp.asarray(slab, CDT), ofs          # pre-cast to bf16 in HBM


def _pack_vector_slab(entries):
    """Pack bias / LN vectors, one per row, into one f32 [rows, 128] slab."""
    rows = ((len(entries) + 7) // 8) * 8
    slab = np.zeros((rows, LANES), np.float32)
    ofs = {}
    for i, (name, v) in enumerate(entries):
        v = np.asarray(v, np.float32).reshape(-1)
        ofs[name] = (i, int(v.shape[0]))
        slab[i, :v.shape[0]] = v
    return jnp.asarray(slab, jnp.float32), ofs


def prepare_params(raw):
    """One-time prep: fold scale / query_embed / xyxyzz permutation into the
    weights and pack everything into two lane-dense slabs + padded patch proj.
    Note: 1/sqrt(dh) is folded pre-bf16-cast (tiny rounding delta vs. ref)."""
    f = lambda x: np.asarray(x, np.float32)
    scale = 1.0 / math.sqrt(DHEAD)
    sa, ca = raw["self_attn"], raw["cross_attn"]

    # bbox-PE angle projection: boxes[:, c] -> angles at cols [c*DPC:(c+1)*DPC]
    jj = np.arange(0, DPC, 2, dtype=np.float64)
    inv_dim_t = (1.0 / (TEMP ** (jj / DPC))).astype(np.float32)
    A = np.zeros((4, 4 * DPC), np.float32)
    for c in range(4):
        A[c, c * DPC + 0:(c + 1) * DPC:2] = inv_dim_t   # sin positions
        A[c, c * DPC + 1:(c + 1) * DPC:2] = inv_dim_t   # cos positions

    # cross-attn KV weight: input rows padded to the 128-wide memory features
    ca_wkv = np.zeros((FEAT_PAD, 2 * D_MODEL), np.float32)
    ca_wkv[:D_MODEL, :D_MODEL] = f(ca["wk"])
    ca_wkv[:D_MODEL, D_MODEL:] = f(ca["wv"])

    # keypoint split head: permute xyzxyz... -> xyxy...zz, pad to 128 lanes
    K = NUM_BODY_POINTS
    perm = np.empty(3 * K, np.int64)
    perm[0:2 * K:2] = 3 * np.arange(K)
    perm[1:2 * K:2] = 3 * np.arange(K) + 1
    perm[2 * K:] = 3 * np.arange(K) + 2
    kp_w_pad = np.zeros((D_MODEL, KP_PAD), np.float32)
    kp_w_pad[:, :3 * K] = f(raw["kp_split_w"])[:, perm]
    kp_b_pad = np.zeros((KP_PAD,), np.float32)
    kp_b_pad[:3 * K] = f(raw["kp_split_b"])[perm]

    w_slab, w_ofs = _pack_weight_slab([
        ("pe_A", A),
        ("pe_w1", f(raw["pe_w1"])),
        ("pe_w2", f(raw["pe_w2"])),
        ("sa_wqkv", np.concatenate([f(sa["wq"]) * scale, f(sa["wk"]), f(sa["wv"])], axis=1)),
        ("sa_wo", f(sa["wo"])),
        ("ca_wq", f(ca["wq"]) * scale),
        ("ca_wkv", ca_wkv),
        ("ca_wo", f(ca["wo"])),
        ("ffn_w1", f(raw["ffn_w1"])),
        ("ffn_w2", f(raw["ffn_w2"])),
        ("kp_w1", f(raw["kp_share_w1"])),
        ("kp_w2", f(raw["kp_share_w2"])),
        ("kp_split", kp_w_pad),
    ])

    v_slab, v_ofs = _pack_vector_slab([
        ("pe_b1", f(raw["pe_b1"])),
        ("pe_b2q", f(raw["pe_b2"]) + f(raw["query_embed"]).reshape(-1)),
        ("sa_bqkv", np.concatenate([f(sa["bq"]) * scale, f(sa["bk"]), f(sa["bv"])])),
        ("sa_bo", f(sa["bo"])),
        ("ca_bq", f(ca["bq"]) * scale),
        ("ca_bkv", np.concatenate([f(ca["bk"]), f(ca["bv"])])),
        ("ca_bo", f(ca["bo"])),
        ("ln1_g", f(raw["ln1_g"])), ("ln1_b", f(raw["ln1_b"])),
        ("ln2_g", f(raw["ln2_g"])), ("ln2_b", f(raw["ln2_b"])),
        ("ln3_g", f(raw["ln3_g"])), ("ln3_b", f(raw["ln3_b"])),
        ("ffn_b1", f(raw["ffn_b1"])), ("ffn_b2", f(raw["ffn_b2"])),
        ("kp_b1", f(raw["kp_share_b1"])), ("kp_b2", f(raw["kp_share_b2"])),
        ("kp_split_b", kp_b_pad),
    ])

    pw = f(raw["patch_w"])
    patch_w_pad = np.zeros((pw.shape[0], FEAT_PAD), np.float32)
    patch_w_pad[:, :D_MODEL] = pw
    patch_b_pad = np.zeros((1, FEAT_PAD), np.float32)
    patch_b_pad[0, :D_MODEL] = f(raw["patch_b"])

    return {"w_slab": w_slab, "w_ofs": w_ofs,
            "v_slab": v_slab, "v_ofs": v_ofs,
            "patch_w_pad": jnp.asarray(patch_w_pad, CDT),
            "patch_b_pad": jnp.asarray(patch_b_pad, jnp.float32)}


# --------------------------------- main -------------------------------------
if __name__ == "__main__":
    key = jax.random.PRNGKey(0)
    k_param, k_img, k_b0, k_b1 = jax.random.split(key, 4)

    prep = prepare_params(init_params(k_param))

    B = 2
    samples = jax.random.normal(k_img, (B, 3, 32, 32), dtype=jnp.float32)   # NCHW
    targets = [
        {"boxes": jax.random.uniform(k_b0, (3, 4), dtype=jnp.float32)},     # 3 boxes
        {"boxes": jax.random.uniform(k_b1, (2, 4), dtype=jnp.float32)},     # 2 boxes
    ]

    out = clip_detr_forward(samples, targets, prep)
    kp = jax.block_until_ready(out["pred_keypoints"])
    assert kp.shape == (B, 3, NUM_BODY_POINTS * 3), kp.shape
    assert bool(jnp.all(jnp.isfinite(kp)))
    print("KERNEL_OK")
</pallas_src>

<mosaic_0001>
module attributes {stable_mosaic.version = 11 : i64} {
  func.func @_patch_embed_kernel(%arg0: i32, %arg1: memref<16x192xf32, #tpu.memory_space<vmem>>, %arg2: memref<192x128xbf16, #tpu.memory_space<vmem>>, %arg3: memref<1x128xf32, #tpu.memory_space<vmem>>, %arg4: memref<16x128xf32, #tpu.memory_space<vmem>>) attributes {dimension_semantics = [#tpu.dimension_semantics<parallel>], iteration_bounds = array<i64: 2>, scalar_prefetch = 0 : i64, scratch_operands = 0 : i64, tpu.core_type = #tpu.core_type<tc>, window_params = [{transform_indices = @transform_0, window_bounds = array<i64: 16, 192>}, {pipeline_mode = #tpu.pipeline_mode<synchronous>, transform_indices = @transform_1, window_bounds = array<i64: 192, 128>}, {pipeline_mode = #tpu.pipeline_mode<synchronous>, transform_indices = @transform_2, window_bounds = array<i64: 1, 128>}, {transform_indices = @transform_3, window_bounds = array<i64: 16, 128>}]} {
    %c0 = arith.constant 0 : index
    %c0_0 = arith.constant 0 : index
    %0 = vector.load %arg1[%c0, %c0_0] : memref<16x192xf32, #tpu.memory_space<vmem>>, vector<16x192xf32>
    %c0_1 = arith.constant 0 : index
    %c0_2 = arith.constant 0 : index
    %1 = vector.load %arg2[%c0_1, %c0_2] : memref<192x128xbf16, #tpu.memory_space<vmem>>, vector<192x128xbf16>
    %2 = arith.truncf %0 : vector<16x192xf32> to vector<16x192xbf16>
    %cst = arith.constant dense<0.000000e+00> : vector<16x128xf32>
    %3 = tpu.matmul %2, %1, %cst {dimension_numbers = #tpu.dot_dimension_numbers<[1], [0], [0], [1], [0, 0, 1, 1], [], []>} : vector<16x192xbf16>, vector<192x128xbf16>, vector<16x128xf32> -> vector<16x128xf32>
    %c0_3 = arith.constant 0 : index
    %c0_4 = arith.constant 0 : index
    %4 = vector.load %arg3[%c0_3, %c0_4] : memref<1x128xf32, #tpu.memory_space<vmem>>, vector<1x128xf32>
    %5 = vector.broadcast %4 : vector<1x128xf32> to vector<16x128xf32>
    %6 = arith.addf %3, %5 : vector<16x128xf32>
    %c0_5 = arith.constant 0 : index
    %c0_6 = arith.constant 0 : index
    %7 = vector.load %arg4[%c0_5, %c0_6] : memref<16x128xf32, #tpu.memory_space<vmem>>, vector<16x128xf32>
    tpu.vector_store %arg4[%c0_5, %c0_6], %6 {strides = array<i32>} : memref<16x128xf32, #tpu.memory_space<vmem>>, vector<16x128xf32>,
    return
  }
  func.func @transform_0(%arg0: i32) -> (i32, i32) {
    %c0_i32 = arith.constant 0 : i32
    %c0_i32_0 = arith.constant 0 : i32
    return %arg0, %c0_i32 : i32, i32
  }
  func.func @transform_1(%arg0: i32) -> (i32, i32) {
    %c0_i32 = arith.constant 0 : i32
    %c0_i32_0 = arith.constant 0 : i32
    %c0_i32_1 = arith.constant 0 : i32
    return %c0_i32, %c0_i32_0 : i32, i32
  }
  func.func @transform_2(%arg0: i32) -> (i32, i32) {
    %c0_i32 = arith.constant 0 : i32
    %c0_i32_0 = arith.constant 0 : i32
    %c0_i32_1 = arith.constant 0 : i32
    return %c0_i32, %c0_i32_0 : i32, i32
  }
  func.func @transform_3(%arg0: i32) -> (i32, i32) {
    %c0_i32 = arith.constant 0 : i32
    %c0_i32_0 = arith.constant 0 : i32
    return %arg0, %c0_i32 : i32, i32
  }
}

</mosaic_0001>

<llo_original>
// kernel: tpu_custom_call.1
$region0: #{tpu_custom_call.1}
  #allocation0 [shape = 'u32[]', space=smem, size = 0x4, offset = 0x4, fixed_abs, tag = 'smem constant byte address 0x4 - core index']
  #allocation1 [shape = 'u32[144,128]{1,0:T(1,128)}', space=vmem, size = 0x12000, scoped, tag = 'internal scratch']
  %s0 = inlined_call_operand.hbm [shape: f32[32,192], index: 0, kind: input, shape index: {}]
  %s1 = inlined_call_operand.hbm [shape: bf16[192,128], index: 1, kind: input, shape index: {}]
  %s2 = inlined_call_operand.vmem [shape: f32[1,128], index: 2, kind: input, shape index: {}]
  %s3 = inlined_call_operand.hbm [shape: f32[32,128], index: 3, kind: output, shape index: {}]
  %s4 = sld [smem:[#allocation0]]
  $region53: #{tpu_custom_call.1} parent=0
    _
  %s6 = ssub.s32 1, %s4
  %s7 = scalar_select 0, %s6, %s4
  $region1: #{tpu_custom_call.1} parent=0
    #allocation2 [shape = 'u8[32768]{0}', space=vmem, size = 0x8000, scoped, tag = 'input window, operand 0']
    #allocation3 [shape = 's32[2]{0}', space=sflag, size = 0x8, scoped, tag = 'scoped memory for tpu_custom_call.1']
    #allocation4 [shape = 's32[2]{0}', space=sflag, size = 0x8, scoped, tag = 'scoped memory for tpu_custom_call.1']
    #allocation5 [shape = 'u8[49152]{0}', space=vmem, size = 0xc000, scoped, tag = 'input window, operand 1, single buffered']
    #allocation6 [shape = 's32[1]{0}', space=sflag, size = 0x4, scoped, tag = 'scoped memory for tpu_custom_call.1']
    #allocation7 [shape = 'u8[16384]{0}', space=vmem, size = 0x4000, scoped, tag = 'output window, operand 0']
    %8 = vsyncpa [#allocation3], 0
    %s9 = scalar_lea.sflag [#allocation3], 1
    %10 = vsyncpa %s9, 0
    %11 = vsyncpa [#allocation6], 0
    %12 = vsyncpa [#allocation4], 0
    %s13 = scalar_lea.sflag [#allocation4], 1
    %14 = vsyncpa %s13, 0
    loop: start=0, step=1, limit=4
    $region2: #{tpu_custom_call.1} parent=1 // loop_pre_header
      _
    $region3: #{tpu_custom_call.1} parent=1 // loop_header
      %s16 = sphi 0, %s20
      %p17 = scmp.ge.s32.totalorder %s16, 4
      %s26 = sphi 0, %s28
      %s29 = sphi 0, %s26
      %s30 = sphi 0, %s29
      %s46 = sphi 0, %s30
      %s50 = sphi 0, %s50
      %s52 = sphi 0, %s50
      %s53 = sphi 0, %s52
      %s67 = sphi 0, %s53
      %s71 = sphi 0, %s71
      %s73 = sphi 0, %s71
      %s74 = sphi 0, %s73
      %s88 = sphi 0, %s74
      %s94 = sphi 0, %s96
      %s97 = sphi 0, %s94
      %s98 = sphi 0, %s97
      %s114 = sphi 0, %s98
    $region4: #{tpu_custom_call.1} parent=1 // loop_header_branch
      %19 = sbr.rel (%p17) target = $region8
    $region5: #{tpu_custom_call.1} parent=1 // loop_body
      %s21 = ssub.s32 %s16, 1
      %s22 = ssub.s32 %s16, 2
      %s23 = sadd.s32 %s16, 1
      %s24 = ssub.s32 %s16, %s23
      %p25 = scmp.eq.s32.totalorder %s24, 0
      %s27 = sadd.s32 %s26, 1
      %s28 = scalar_select %p25, %s26, %s27
      %p31 = pneg %p25
      %p32 = scmp.eq.s32.totalorder %s16, 1
      %p33 = por %p31, %p32
      %p34 = scmp.ne.s32.totalorder %s26, %s29
      %p35 = scmp.eq.s32.totalorder %s16, 0
      %p36 = por %p34, %p35
      %p37 = scmp.ne.s32.totalorder %s26, %s29
      %p38 = scmp.eq.s32.totalorder %s21, 1
      %p39 = por %p37, %p38
      %p40 = scmp.ne.s32.totalorder %s29, %s30
      %p41 = scmp.eq.s32.totalorder %s21, 0
      %p42 = por %p40, %p41
      %p43 = scmp.ne.s32.totalorder %s29, %s30
      %p44 = scmp.eq.s32.totalorder %s22, 1
      %p45 = por %p43, %p44
      %p47 = scmp.ne.s32.totalorder %s30, %s46
      %p48 = scmp.eq.s32.totalorder %s22, 0
      %p49 = por %p47, %p48
      %s51 = sadd.s32 %s50, 1
      %p54 = scmp.eq.s32.totalorder %s16, 1
      %p55 = scmp.ne.s32.totalorder %s50, %s52
      %p56 = scmp.eq.s32.totalorder %s16, 0
      %p57 = por %p55, %p56
      %p58 = scmp.ne.s32.totalorder %s50, %s52
      %p59 = scmp.eq.s32.totalorder %s21, 1
      %p60 = por %p58, %p59
      %p61 = scmp.ne.s32.totalorder %s52, %s53
      %p62 = scmp.eq.s32.totalorder %s21, 0
      %p63 = por %p61, %p62
      %p64 = scmp.ne.s32.totalorder %s52, %s53
      %p65 = scmp.eq.s32.totalorder %s22, 1
      %p66 = por %p64, %p65
      %p68 = scmp.ne.s32.totalorder %s53, %s67
      %p69 = scmp.eq.s32.totalorder %s22, 0
      %p70 = por %p68, %p69
      %s72 = sadd.s32 %s71, 1
      %p75 = scmp.eq.s32.totalorder %s16, 1
      %p76 = scmp.ne.s32.totalorder %s71, %s73
      %p77 = scmp.eq.s32.totalorder %s16, 0
      %p78 = por %p76, %p77
      %p79 = scmp.ne.s32.totalorder %s71, %s73
      %p80 = scmp.eq.s32.totalorder %s21, 1
      %p81 = por %p79, %p80
      %p82 = scmp.ne.s32.totalorder %s73, %s74
      %p83 = scmp.eq.s32.totalorder %s21, 0
      %p84 = por %p82, %p83
      %p85 = scmp.ne.s32.totalorder %s73, %s74
      %p86 = scmp.eq.s32.totalorder %s22, 1
      %p87 = por %p85, %p86
      %p89 = scmp.ne.s32.totalorder %s74, %s88
      %p90 = scmp.eq.s32.totalorder %s22, 0
      %p91 = por %p89, %p90
      %s92 = ssub.s32 %s16, %s23
      %p93 = scmp.eq.s32.totalorder %s92, 0
      %s95 = sadd.s32 %s94, 1
      %s96 = scalar_select %p93, %s94, %s95
      %p99 = pneg %p93
      %p100 = scmp.eq.s32.totalorder %s16, 1
      %p101 = por %p99, %p100
      %p102 = scmp.ne.s32.totalorder %s94, %s97
      %p103 = scmp.eq.s32.totalorder %s16, 0
      %p104 = por %p102, %p103
      %p105 = scmp.ne.s32.totalorder %s94, %s97
      %p106 = scmp.eq.s32.totalorder %s21, 1
      %p107 = por %p105, %p106
      %p108 = scmp.ne.s32.totalorder %s97, %s98
      %p109 = scmp.eq.s32.totalorder %s21, 0
      %p110 = por %p108, %p109
      %p111 = scmp.ne.s32.totalorder %s97, %s98
      %p112 = scmp.eq.s32.totalorder %s22, 1
      %p113 = por %p111, %p112
      %p115 = scmp.ne.s32.totalorder %s98, %s114
      %p116 = scmp.eq.s32.totalorder %s22, 0
      %p117 = por %p115, %p116
      %p118 = scmp.le.s32.totalorder 1, %s16
      %p119 = scmp.lt.s32.totalorder %s16, 3
      %p120 = pnand %p118, %p119
      %p121 = pneg %p120
      // Predicated region
      $region9: #{tpu_custom_call.1} parent=5 // pred_check
        _
      $region10: #{tpu_custom_call.1} parent=5 // pred_check_branch
        %123 = sbr.rel (%p120) target = $region12
      $region11: #{tpu_custom_call.1} parent=5 // pred_region
        %s124 = ssub.s32 %s16, 1
        // Predicated region
        $region13: #{tpu_custom_call.1} parent=11 // pred_check
          %p125 = pneg %p63
        $region14: #{tpu_custom_call.1} parent=11 // pred_check_branch
          %127 = sbr.rel (%p125) target = $region16
        $region15: #{tpu_custom_call.1} parent=11 // pred_region
          %s129 = ssub.s32 1536, 1536
          %130 = vsyncadd [#allocation6], %s129
          %s131 = sshll.u32 [#allocation5], 4
          %s132 = int_to_ptr.vmem [resolvable:$true] %s131
          %137 = dma.hbm_to_vmem [thread:$0]  %s1, 1536, %s132, [#allocation6], 64, 64, 4
        $region16: #{tpu_custom_call.1} parent=11 // pred_fallthru
          _
        // Predicated region
        $region17: #{tpu_custom_call.1} parent=11 // pred_check
          %p138 = pneg %p84
        $region18: #{tpu_custom_call.1} parent=11 // pred_check_branch
          %140 = sbr.rel (%p138) target = $region20
        $region19: #{tpu_custom_call.1} parent=11 // pred_region
          _
        $region20: #{tpu_custom_call.1} parent=11 // pred_fallthru
          _
      $region12: #{tpu_custom_call.1} parent=5 // pred_fallthru
        _
      %p141 = scmp.lt.s32.totalorder %s16, 2
      // Predicated region
      $region21: #{tpu_custom_call.1} parent=5 // pred_check
        %p142 = pneg %p141
      $region22: #{tpu_custom_call.1} parent=5 // pred_check_branch
        %144 = sbr.rel (%p142) target = $region24
      $region23: #{tpu_custom_call.1} parent=5 // pred_region
        // Predicated region
        $region25: #{tpu_custom_call.1} parent=23 // pred_check
          %p145 = pneg %p36
        $region26: #{tpu_custom_call.1} parent=23 // pred_check_branch
          %147 = sbr.rel (%p145) target = $region28
        $region27: #{tpu_custom_call.1} parent=23 // pred_region
          %s148 = sand.u32 %s26, 1
          %s149 = scalar_lea.sflag [#allocation3], %s148
          %s150 = sand.u32 %s26, 1
          %s151 = smul.addr %s150, 32
          %s152 = scalar_lea.vmem [#allocation2], %s151
          %s153 = smul.u32 2, %s16
          %s155 = ssub.s32 512, 512
          %156 = vsyncadd %s149, %s155
          %s157 = smul.addr %s153, 2
          %s158 = smul.addr %s157, 128
          %s159 = scalar_lea.hbm %s0, %s158
          %s160 = sshll.u32 %s152, 4
          %s161 = int_to_ptr.vmem [resolvable:$true] %s160
          %166 = dma.hbm_to_vmem [thread:$0]  %s159, 512, %s161, %s149, 256, 256, 16
        $region28: #{tpu_custom_call.1} parent=23 // pred_fallthru
          _
      $region24: #{tpu_custom_call.1} parent=5 // pred_fallthru
        _
      %p167 = scmp.le.s32.totalorder 1, %s16
      %p168 = scmp.lt.s32.totalorder %s16, 3
      %p169 = pnand %p167, %p168
      %p170 = pneg %p169
      // Predicated region
      $region29: #{tpu_custom_call.1} parent=5 // pred_check
        _
      $region30: #{tpu_custom_call.1} parent=5 // pred_check_branch
        %172 = sbr.rel (%p169) target = $region32
      $region31: #{tpu_custom_call.1} parent=5 // pred_region
        %s173 = ssub.s32 %s16, 1
        %s174 = sand.u32 %s29, 1
        %s175 = scalar_lea.sflag [#allocation3], %s174
        %s176 = sand.u32 %s29, 1
        %s177 = smul.addr %s176, 32
        %s178 = scalar_lea.vmem [#allocation2], %s177
        // Predicated region
        $region33: #{tpu_custom_call.1} parent=31 // pred_check
          %p179 = pneg %p42
        $region34: #{tpu_custom_call.1} parent=31 // pred_check_branch
          %181 = sbr.rel (%p179) target = $region36
        $region35: #{tpu_custom_call.1} parent=31 // pred_region
          %182 = dma.done %s175, 512
        $region36: #{tpu_custom_call.1} parent=31 // pred_fallthru
          _
        // Predicated region
        $region37: #{tpu_custom_call.1} parent=31 // pred_check
          %p183 = pneg %p63
        $region38: #{tpu_custom_call.1} parent=31 // pred_check_branch
          %185 = sbr.rel (%p183) target = $region40
        $region39: #{tpu_custom_call.1} parent=31 // pred_region
          %186 = dma.done [#allocation6], 1536
        $region40: #{tpu_custom_call.1} parent=31 // pred_fallthru
          _
        %s187 = sand.u32 %s29, 1
        %s188 = scalar_lea.sflag [#allocation3], %s187
        %s189 = sand.u32 %s29, 1
        %s190 = smul.addr %s189, 32
        %s191 = scalar_lea.vmem [#allocation2], %s190
        %p192 = pneg %p42
        %p193 = pneg %p39
        %p194 = pneg %p63
        %p195 = pneg %p60
        %p196 = pneg %p84
        %p197 = pneg %p81
        %p198 = pneg %p110
        %p199 = pneg %p107
        %s200 = sand.u32 %s97, 1
        %s201 = scalar_lea.sflag [#allocation4], %s200
        %s202 = sand.u32 %s97, 1
        %s203 = smul.addr %s202, 16
        %s204 = scalar_lea.vmem [#allocation7], %s203
        %s205 = smul.u32 2, %s21
        %s206 = smul.u32 2, %s21
        %v208 = vld [vmem:[%s178] sm:$0xff]
        %v209 = vld [vmem:[%s178 + $0x8] sm:$0xff]
        %v210 = vld [vmem:[%s178 + $0x10] sm:$0xff]
        %v211 = vld [vmem:[%s178 + $0x18] sm:$0xff]
        %v212 = vld [vmem:[#allocation5] sm:$0xf]
        %v213 = vld [vmem:[#allocation5 + $0x4] sm:$0xf]
        %v214 = vld [vmem:[#allocation5 + $0x8] sm:$0xf]
        %v215 = vld [vmem:[#allocation5 + $0xc] sm:$0xf]
        %v216 = vld [vmem:[#allocation5 + $0x10] sm:$0xf]
        %v217 = vld [vmem:[#allocation5 + $0x14] sm:$0xf]
        %v218 = vld [vmem:[#allocation5 + $0x18] sm:$0xf]
        %v219 = vld [vmem:[#allocation5 + $0x1c] sm:$0xf]
        %v220 = vld [vmem:[#allocation5 + $0x20] sm:$0xf]
        %v221 = vld [vmem:[#allocation5 + $0x24] sm:$0xf]
        %v222 = vld [vmem:[#allocation5 + $0x28] sm:$0xf]
        %v223 = vld [vmem:[#allocation5 + $0x2c] sm:$0xf]
        %v224 = vld [vmem:[#allocation5 + $0x30] sm:$0xf]
        %v225 = vld [vmem:[#allocation5 + $0x34] sm:$0xf]
        %v226 = vld [vmem:[#allocation5 + $0x38] sm:$0xf]
        %v227 = vld [vmem:[#allocation5 + $0x3c] sm:$0xf]
        %v228 = vld [vmem:[#allocation5 + $0x40] sm:$0xf]
        %v229 = vld [vmem:[#allocation5 + $0x44] sm:$0xf]
        %v230 = vld [vmem:[#allocation5 + $0x48] sm:$0xf]
        %v231 = vld [vmem:[#allocation5 + $0x4c] sm:$0xf]
        %v232 = vld [vmem:[#allocation5 + $0x50] sm:$0xf]
        %v233 = vld [vmem:[#allocation5 + $0x54] sm:$0xf]
        %v234 = vld [vmem:[#allocation5 + $0x58] sm:$0xf]
        %v235 = vld [vmem:[#allocation5 + $0x5c] sm:$0xf]
        %v236 = vpack.c.bf16 %v210, %v208
        %v237 = vpack.c.bf16 %v211, %v209
        %v238 = vld [vmem:[%s2] sm:$0x1]
        %v240 = vlaneseq
        %v241 = vshrl.u32 %v240, 7
        %v242 = vsub.s32 0, %v241
        %v243 = vrot.slane %v238, %v242
        %v269 = vunpack.c.l.b16 %v212
        %v270 = vunpack.c.l.b16 %v213
        %v271 = vunpack.c.l.b16 %v214
        %v272 = vunpack.c.l.b16 %v215
        %v273 = vunpack.c.l.b16 %v216
        %v274 = vunpack.c.l.b16 %v217
        %v275 = vunpack.c.l.b16 %v218
        %v276 = vunpack.c.l.b16 %v219
        %v277 = vunpack.c.l.b16 %v220
        %v278 = vunpack.c.l.b16 %v221
        %v279 = vunpack.c.l.b16 %v222
        %v280 = vunpack.c.l.b16 %v223
        %v281 = vunpack.c.l.b16 %v224
        %v282 = vunpack.c.l.b16 %v225
        %v283 = vunpack.c.l.b16 %v226
        %v284 = vunpack.c.l.b16 %v227
        %v285 = vunpack.c.l.b16 %v228
        %v286 = vunpack.c.l.b16 %v229
        %v287 = vunpack.c.l.b16 %v230
        %v288 = vunpack.c.l.b16 %v231
        %v289 = vunpack.c.l.b16 %v232
        %v290 = vunpack.c.l.b16 %v233
        %v291 = vunpack.c.l.b16 %v234
        %v292 = vunpack.c.l.b16 %v235
        %v293 = vpack.c.b16 %v270, %v269
        %v294 = vpack.c.b16 %v272, %v271
        %v295 = vpack.c.b16 %v274, %v273
        %v296 = vpack.c.b16 %v276, %v275
        %v297 = vpack.c.b16 %v278, %v277
        %v298 = vpack.c.b16 %v280, %v279
        %v299 = vpack.c.b16 %v282, %v281
        %v300 = vpack.c.b16 %v284, %v283
        %v301 = vpack.c.b16 %v286, %v285
        %v302 = vpack.c.b16 %v288, %v287
        %v303 = vpack.c.b16 %v290, %v289
        %v304 = vpack.c.b16 %v292, %v291
        %vm317 = vcmask 523264
        %v319 = vsel %vm317, %v237, 0
        %321 = vmatprep.subr.bf16.mxu0 0
        %322 = vmatpush1.bf16.msra.mxu0 %v293
        %323 = vmatprep.subr.bf16.mxu0 0
        %324 = vmatpush1.bf16.msra.mxu0 %v294
        %325 = vmatprep.subr.bf16.mxu0 0
        %326 = vmatpush1.bf16.msra.mxu0 %v295
        %327 = vmatprep.subr.bf16.mxu0 0
        %328 = vmatpush1.bf16.msra.mxu0 %v296
        %329 = vmatprep.subr.bf16.mxu0 0
        %330 = vmatpush1.bf16.msra.mxu0 %v297
        %331 = vmatprep.subr.bf16.mxu0 0
        %332 = vmatpush1.bf16.msra.mxu0 %v298
        %333 = vmatprep.subr.bf16.mxu0 0
        %334 = vmatpush1.bf16.msra.mxu0 %v299
        %335 = vmatprep.subr.bf16.mxu0 0
        %336 = vmatpush1.bf16.msra.mxu0 %v300
        %337 = vmatprep.subr.bf16.mxu0 0
        %338 = vmatpush1.bf16.msra.mxu0 %v301
        %339 = vmatprep.subr.bf16.mxu0 0
        %340 = vmatpush1.bf16.msra.mxu0 %v302
        %341 = vmatprep.subr.bf16.mxu0 0
        %342 = vmatpush1.bf16.msra.mxu0 %v303
        %343 = vmatprep.subr.bf16.mxu0 0
        %344 = vmatpush1.bf16.msra.mxu0 %v304
        %345 = vmatprep.subr.bf16.mxu0 0
        %346 = vmatpush1.bf16.msra.mxu0 0
        %347 = vmatprep.subr.bf16.mxu0 0
        %348 = vmatpush1.bf16.msra.mxu0 0
        %349 = vmatprep.subr.bf16.mxu0 0
        %350 = vmatpush1.bf16.msra.mxu0 0
        %351 = vmatprep.subr.bf16.mxu0 0
        %352 = vmatpush1.bf16.msra.mxu0 0
        %353 = vmatprep.mubr.bf16.mxu0 %v319
        %354 = vmatmul.mubr.bf16.gmra.mrb[0].mxu0 %v236
        %v355 = vpop.f32.mrb[0].mxu0
        %v356 = vadd.f32 %v243, %v355
        %v357 = vpop.f32.mrb[0].mxu0
        %v358 = vpop.f32.mrb[0].mxu0
        %v359 = vadd.f32 %v243, %v358
        %v360 = vpop.f32.mrb[0].mxu0
        %361 = vdwg.mxu0
        %362 = vst [vmem:[%s204] sm:$0xff] %v356
        %363 = vst [vmem:[%s204 + $0x8] sm:$0xff] %v359
        %s364 = sand.u32 %s97, 1
        %s365 = scalar_lea.sflag [#allocation4], %s364
        %s366 = sand.u32 %s97, 1
        %s367 = smul.addr %s366, 16
        %s368 = scalar_lea.vmem [#allocation7], %s367
        // Predicated region
        $region41: #{tpu_custom_call.1} parent=31 // pred_check
          %p369 = pneg %p107
        $region42: #{tpu_custom_call.1} parent=31 // pred_check_branch
          %371 = sbr.rel (%p369) target = $region44
        $region43: #{tpu_custom_call.1} parent=31 // pred_region
          %s372 = smul.u32 2, %s21
          %s374 = ssub.s32 256, 256
          %375 = vsyncadd %s365, %s374
          %s376 = smul.addr %s372, 128
          %s377 = scalar_lea.hbm %s3, %s376
          %s378 = sshll.u32 %s368, 4
          %s379 = int_to_ptr.vmem [resolvable:$true] %s378
          %384 = dma.vmem_to_hbm [thread:$0]  %s379, 256, %s377, %s365, 128, 128, 8
        $region44: #{tpu_custom_call.1} parent=31 // pred_fallthru
          _
      $region32: #{tpu_custom_call.1} parent=5 // pred_fallthru
        _
      %p385 = scmp.le.s32.totalorder 2, %s16
      // Predicated region
      $region45: #{tpu_custom_call.1} parent=5 // pred_check
        %p386 = pneg %p385
      $region46: #{tpu_custom_call.1} parent=5 // pred_check_branch
        %388 = sbr.rel (%p386) target = $region48
      $region47: #{tpu_custom_call.1} parent=5 // pred_region
        %s389 = ssub.s32 %s16, 2
        // Predicated region
        $region49: #{tpu_custom_call.1} parent=47 // pred_check
          %p390 = pneg %p113
        $region50: #{tpu_custom_call.1} parent=47 // pred_check_branch
          %392 = sbr.rel (%p390) target = $region52
        $region51: #{tpu_custom_call.1} parent=47 // pred_region
          %s393 = sand.u32 %s98, 1
          %s394 = scalar_lea.sflag [#allocation4], %s393
          %s395 = sand.u32 %s98, 1
          %s396 = smul.addr %s395, 16
          %s397 = scalar_lea.vmem [#allocation7], %s396
          %398 = dma.done %s394, 256
        $region52: #{tpu_custom_call.1} parent=47 // pred_fallthru
          _
      $region48: #{tpu_custom_call.1} parent=5 // pred_fallthru
        _
    $region6: #{tpu_custom_call.1} parent=1 // loop_footer
      %s20 = sadd.s32 1, %s16
    $region7: #{tpu_custom_call.1} parent=1 // loop_footer_branch
      %15 = sbr.rel target = $region3
    $region8: #{tpu_custom_call.1} parent=1 // loop_exit
      _
    %399 = vsyncpa [#allocation3], 1
    %s400 = scalar_lea.sflag [#allocation3], 1
    %401 = vsyncpa %s400, 1
    %402 = vsyncpa [#allocation6], 1
    %403 = vsyncpa [#allocation4], 1
    %s404 = scalar_lea.sflag [#allocation4], 1
    %405 = vsyncpa %s404, 1

</llo_original>
